<compile_context>
chip_gen: v7x
topology: tpu7x:2x2x1
jax: 0.10.0
libtpu: 0.0.40
codegen_flags: <defaults>
</compile_context>

<pallas_src>
import functools

import jax
import jax.numpy as jnp
from jax.experimental import pallas as pl
from jax.experimental.pallas import tpu as pltpu


def _block_mask(mask_ref, mpad_scr, row_scr, *, block_size, pad_lo):
    """1 - maxpool(mask) for one (1, H, W, C) block, computed in float32."""
    _, H, W, _ = mask_ref.shape
    bs = block_size

    # Zero-padded copy of the mask in a VMEM scratch (halo handled in-kernel,
    # never materialized in HBM).  Zero padding == -inf padding since mask>=0.
    mpad_scr[...] = jnp.zeros_like(mpad_scr)
    mpad_scr[:, pad_lo:pad_lo + H, pad_lo:pad_lo + W, :] = (
        mask_ref[...].astype(jnp.float32))

    # Separable stride-1 max pool: along W first (keeping the padded H) ...
    row = mpad_scr[:, :, 0:W, :]
    for dj in range(1, bs):
        row = jnp.maximum(row, mpad_scr[:, :, dj:dj + W, :])
    row_scr[...] = row                       # (1, H+bs-1, W, C) intermediate

    # ... then along H.
    pooled = row_scr[:, 0:H, :, :]
    for di in range(1, bs):
        pooled = jnp.maximum(pooled, row_scr[:, di:di + H, :, :])

    return 1.0 - pooled                      # (1, H, W, C) float32


def _dropblock_sum_kernel(mask_ref, psum_ref, mpad_scr, row_scr, *,
                          block_size, pad_lo):
    """Pass A: per-image sum of block_mask (float32)."""
    bm = _block_mask(mask_ref, mpad_scr, row_scr,
                     block_size=block_size, pad_lo=pad_lo)
    total = jnp.sum(bm)                      # accumulate in float32
    # (8, 128) trailer keeps the tiny partial-sum output on a lane-aligned
    # VMEM tile; host reads element [n, 0, 0].
    psum_ref[...] = jnp.full(psum_ref.shape, total, dtype=jnp.float32)


def _dropblock_apply_kernel(scale_ref, x_ref, mask_ref, o_ref, mpad_scr,
                            row_scr, *, block_size, pad_lo):
    """Pass B: out = x * block_mask * scale (scale is a scalar from SMEM)."""
    bm = _block_mask(mask_ref, mpad_scr, row_scr,
                     block_size=block_size, pad_lo=pad_lo)
    scale = scale_ref[0, 0]
    x = x_ref[...].astype(jnp.float32)
    o_ref[...] = (x * bm * scale).astype(o_ref.dtype)


def dropblock2d_apply(x, mask, block_size):
    """x, mask: NCHW; mask is float {0,1} with its borders already zeroed."""
    bs = block_size
    pad_lo = bs // 2
    N, C, H, W = x.shape

    # Channels-last so C maps to lanes inside the kernels.
    xt = jnp.transpose(x, (0, 2, 3, 1))
    mt = jnp.transpose(mask, (0, 2, 3, 1)).astype(x.dtype)

    scratch = [
        pltpu.VMEM((1, H + bs - 1, W + bs - 1, C), jnp.float32),  # padded mask
        pltpu.VMEM((1, H + bs - 1, W, C), jnp.float32),           # row-pooled
    ]
    cparams = pltpu.CompilerParams(dimension_semantics=("parallel",))
    img_spec = pl.BlockSpec((1, H, W, C), lambda n: (n, 0, 0, 0))

    # ---- Pass A: per-image sum(block_mask) -------------------------------
    psums = pl.pallas_call(
        functools.partial(_dropblock_sum_kernel, block_size=bs, pad_lo=pad_lo),
        out_shape=jax.ShapeDtypeStruct((N, 8, 128), jnp.float32),
        grid=(N,),
        in_specs=[img_spec],
        out_specs=pl.BlockSpec((1, 8, 128), lambda n: (n, 0, 0)),
        scratch_shapes=scratch,
        compiler_params=cparams,
    )(mt)

    total = jnp.sum(psums[:, 0, 0])
    numel = jnp.float32(N * C * H * W)
    # TODO(synk): mmdet divides by sum() unconditionally (NaN if everything is
    # dropped); we guard the pathological total == 0 case for robustness.
    scale = jnp.where(total > 0, numel / total, jnp.float32(0.0))
    scale = jnp.reshape(scale.astype(jnp.float32), (1, 1))

    # ---- Pass B: out = x * block_mask * scale -----------------------------
    out_t = pl.pallas_call(
        functools.partial(_dropblock_apply_kernel, block_size=bs,
                          pad_lo=pad_lo),
        out_shape=jax.ShapeDtypeStruct((N, H, W, C), x.dtype),
        grid=(N,),
        in_specs=[
            pl.BlockSpec((1, 1), lambda n: (0, 0),
                         memory_space=pltpu.MemorySpace.SMEM),
            img_spec,
            img_spec,
        ],
        out_specs=img_spec,
        scratch_shapes=scratch,
        compiler_params=cparams,
    )(scale, xt, mt)

    return jnp.transpose(out_t, (0, 3, 1, 2))


class DropBlock2D:
    """JAX port of mmdet's DropBlock2D (forward semantics)."""

    def __init__(self, drop_prob, block_size, steps=100):
        self.drop_prob = 0.0                       # matches the PyTorch __init__
        self.block_size = block_size
        self.i = 0
        self.drop_values = jnp.linspace(0.0, drop_prob, steps)
        self.training = True

    def _compute_gamma(self, x):
        height, width = x.shape[2:]
        bs = self.block_size
        return (self.drop_prob * height * width
                / (bs ** 2 * (height - bs + 1) * (width - bs + 1)))

    def __call__(self, x, key):
        if not self.training or self.drop_prob == 0.0:
            return x
        gamma = self._compute_gamma(x)
        # TODO(synk): torch.rand's RNG stream cannot be reproduced bit-exactly;
        # we draw the bernoulli mask with jax.random.uniform + explicit key
        # (it could also be drawn in-kernel with pltpu.prng_random_bits to
        # skip the HBM round trip, at the cost of testability).
        mask = (jax.random.uniform(key, x.shape) < gamma).astype(x.dtype)

        bs2 = self.block_size // 2
        H, W = x.shape[2], x.shape[3]
        # Zero the borders (same four slice assignments as the PyTorch code).
        mask = mask.at[:, :, :bs2, :].set(0)
        mask = mask.at[:, :, H - bs2:, :].set(0)
        mask = mask.at[:, :, :, :bs2].set(0)
        mask = mask.at[:, :, :, W - bs2:].set(0)

        out = dropblock2d_apply(x, mask, self.block_size)
        self.step()
        return out

    def step(self):
        if self.i < len(self.drop_values):
            self.drop_prob = float(self.drop_values[self.i])
        self.i += 1


def _reference(x, mask, block_size):
    """Pure-JAX reference of the Pallas portion (for the sanity check)."""
    N, C, H, W = x.shape
    pad_lo = block_size // 2
    pad_hi = block_size - 1 - pad_lo
    mpad = jnp.pad(mask.astype(jnp.float32),
                   ((0, 0), (0, 0), (pad_lo, pad_hi), (pad_lo, pad_hi)))
    pooled = mpad[:, :, 0:H, 0:W]
    for di in range(block_size):
        for dj in range(block_size):
            pooled = jnp.maximum(pooled, mpad[:, :, di:di + H, dj:dj + W])
    block_mask = 1.0 - pooled
    out = x * block_mask * (N * C * H * W) / jnp.sum(block_mask)
    return out.astype(x.dtype)


if __name__ == "__main__":
    key = jax.random.PRNGKey(0)
    kx, km = jax.random.split(key)

    x = jax.random.normal(kx, (2, 4, 16, 16), dtype=jnp.float32)

    mod = DropBlock2D(drop_prob=0.3, block_size=3, steps=10)
    mod.drop_prob = 0.15   # deterministically exercise the (training) drop path

    out = jax.block_until_ready(mod(x, km))
    assert out.shape == x.shape and out.dtype == x.dtype

    # Rebuild the exact same mask and check against a plain-JAX reference.
    gamma = 0.15 * 16 * 16 / (3 ** 2 * (16 - 3 + 1) * (16 - 3 + 1))
    m = (jax.random.uniform(km, x.shape) < gamma).astype(x.dtype)
    m = m.at[:, :, :1, :].set(0)
    m = m.at[:, :, 15:, :].set(0)
    m = m.at[:, :, :, :1].set(0)
    m = m.at[:, :, :, 15:].set(0)
    ref = _reference(x, m, 3)
    assert jnp.allclose(out, ref, atol=1e-5, rtol=1e-5)

    print("KERNEL_OK")
</pallas_src>

<mosaic_0001>
module attributes {stable_mosaic.version = 11 : i64} {
  func.func @_dropblock_sum_kernel(%arg0: i32, %arg1: memref<1x16x16x4xf32, #tpu.memory_space<vmem>>, %arg2: memref<1x8x128xf32, #tpu.memory_space<vmem>>, %arg3: memref<1x18x18x4xf32, #tpu.memory_space<vmem>>, %arg4: memref<1x18x16x4xf32, #tpu.memory_space<vmem>>) attributes {dimension_semantics = [#tpu.dimension_semantics<parallel>], iteration_bounds = array<i64: 2>, scalar_prefetch = 0 : i64, scratch_operands = 2 : i64, tpu.core_type = #tpu.core_type<tc>, window_params = [{transform_indices = @transform_0, window_bounds = array<i64: 1, 16, 16, 4>}, {transform_indices = @transform_1, window_bounds = array<i64: 1, 8, 128>}]} {
    %cst = arith.constant 0.000000e+00 : f32
    %0 = vector.broadcast %cst : f32 to vector<1x18x18x4xf32>
    %c0 = arith.constant 0 : index
    %c0_0 = arith.constant 0 : index
    %c0_1 = arith.constant 0 : index
    %c0_2 = arith.constant 0 : index
    %1 = vector.load %arg3[%c0, %c0_0, %c0_1, %c0_2] : memref<1x18x18x4xf32, #tpu.memory_space<vmem>>, vector<1x18x18x4xf32>
    tpu.vector_store %arg3[%c0, %c0_0, %c0_1, %c0_2], %0 {strides = array<i32>} : memref<1x18x18x4xf32, #tpu.memory_space<vmem>>, vector<1x18x18x4xf32>,
    %c0_3 = arith.constant 0 : index
    %c0_4 = arith.constant 0 : index
    %c0_5 = arith.constant 0 : index
    %c0_6 = arith.constant 0 : index
    %2 = vector.load %arg1[%c0_3, %c0_4, %c0_5, %c0_6] : memref<1x16x16x4xf32, #tpu.memory_space<vmem>>, vector<1x16x16x4xf32>
    %c0_7 = arith.constant 0 : index
    %c1 = arith.constant 1 : index
    %c1_8 = arith.constant 1 : index
    %c0_9 = arith.constant 0 : index
    %3 = vector.load %arg3[%c0_7, %c1, %c1_8, %c0_9] : memref<1x18x18x4xf32, #tpu.memory_space<vmem>>, vector<1x16x16x4xf32>
    tpu.vector_store %arg3[%c0_7, %c1, %c1_8, %c0_9], %2 {strides = array<i32>} : memref<1x18x18x4xf32, #tpu.memory_space<vmem>>, vector<1x16x16x4xf32>,
    %c0_10 = arith.constant 0 : index
    %c0_11 = arith.constant 0 : index
    %c0_12 = arith.constant 0 : index
    %c0_13 = arith.constant 0 : index
    %4 = vector.load %arg3[%c0_10, %c0_11, %c0_12, %c0_13] : memref<1x18x18x4xf32, #tpu.memory_space<vmem>>, vector<1x18x16x4xf32>
    %c0_14 = arith.constant 0 : index
    %c0_15 = arith.constant 0 : index
    %c1_16 = arith.constant 1 : index
    %c0_17 = arith.constant 0 : index
    %5 = vector.load %arg3[%c0_14, %c0_15, %c1_16, %c0_17] : memref<1x18x18x4xf32, #tpu.memory_space<vmem>>, vector<1x18x16x4xf32>
    %6 = arith.maximumf %4, %5 : vector<1x18x16x4xf32>
    %c0_18 = arith.constant 0 : index
    %c0_19 = arith.constant 0 : index
    %c2 = arith.constant 2 : index
    %c0_20 = arith.constant 0 : index
    %7 = vector.load %arg3[%c0_18, %c0_19, %c2, %c0_20] : memref<1x18x18x4xf32, #tpu.memory_space<vmem>>, vector<1x18x16x4xf32>
    %8 = arith.maximumf %6, %7 : vector<1x18x16x4xf32>
    %c0_21 = arith.constant 0 : index
    %c0_22 = arith.constant 0 : index
    %c0_23 = arith.constant 0 : index
    %c0_24 = arith.constant 0 : index
    %9 = vector.load %arg4[%c0_21, %c0_22, %c0_23, %c0_24] : memref<1x18x16x4xf32, #tpu.memory_space<vmem>>, vector<1x18x16x4xf32>
    tpu.vector_store %arg4[%c0_21, %c0_22, %c0_23, %c0_24], %8 {strides = array<i32>} : memref<1x18x16x4xf32, #tpu.memory_space<vmem>>, vector<1x18x16x4xf32>,
    %c0_25 = arith.constant 0 : index
    %c0_26 = arith.constant 0 : index
    %c0_27 = arith.constant 0 : index
    %c0_28 = arith.constant 0 : index
    %10 = vector.load %arg4[%c0_25, %c0_26, %c0_27, %c0_28] : memref<1x18x16x4xf32, #tpu.memory_space<vmem>>, vector<1x16x16x4xf32>
    %c0_29 = arith.constant 0 : index
    %c1_30 = arith.constant 1 : index
    %c0_31 = arith.constant 0 : index
    %c0_32 = arith.constant 0 : index
    %11 = vector.load %arg4[%c0_29, %c1_30, %c0_31, %c0_32] : memref<1x18x16x4xf32, #tpu.memory_space<vmem>>, vector<1x16x16x4xf32>
    %12 = arith.maximumf %10, %11 : vector<1x16x16x4xf32>
    %c0_33 = arith.constant 0 : index
    %c2_34 = arith.constant 2 : index
    %c0_35 = arith.constant 0 : index
    %c0_36 = arith.constant 0 : index
    %13 = vector.load %arg4[%c0_33, %c2_34, %c0_35, %c0_36] : memref<1x18x16x4xf32, #tpu.memory_space<vmem>>, vector<1x16x16x4xf32>
    %14 = arith.maximumf %12, %13 : vector<1x16x16x4xf32>
    %cst_37 = arith.constant 1.000000e+00 : f32
    %15 = vector.broadcast %cst_37 : f32 to vector<1x16x16x4xf32>
    %16 = arith.subf %15, %14 : vector<1x16x16x4xf32>
    %17 = vector.shape_cast %16 : vector<1x16x16x4xf32> to vector<1x1x16x16x4xf32>
    %cst_38 = arith.constant dense<0.000000e+00> : vector<1xf32>
    %18 = vector.multi_reduction <add>, %17, %cst_38 [1, 2, 3, 4] : vector<1x1x16x16x4xf32> to vector<1xf32>
    %19 = vector.shape_cast %18 : vector<1xf32> to vector<1x1x1x1x1xf32>
    %20 = vector.extract %19[0, 0, 0, 0, 0] : f32 from vector<1x1x1x1x1xf32>
    %21 = vector.broadcast %20 : f32 to vector<1x8x128xf32>
    %c0_39 = arith.constant 0 : index
    %c0_40 = arith.constant 0 : index
    %c0_41 = arith.constant 0 : index
    %22 = vector.load %arg2[%c0_39, %c0_40, %c0_41] : memref<1x8x128xf32, #tpu.memory_space<vmem>>, vector<1x8x128xf32>
    tpu.vector_store %arg2[%c0_39, %c0_40, %c0_41], %21 {strides = array<i32>} : memref<1x8x128xf32, #tpu.memory_space<vmem>>, vector<1x8x128xf32>,
    return
  }
  func.func @transform_0(%arg0: i32) -> (i32, i32, i32, i32) {
    %c0_i32 = arith.constant 0 : i32
    %c0_i32_0 = arith.constant 0 : i32
    %c0_i32_1 = arith.constant 0 : i32
    %c0_i32_2 = arith.constant 0 : i32
    return %arg0, %c0_i32, %c0_i32_0, %c0_i32_1 : i32, i32, i32, i32
  }
  func.func @transform_1(%arg0: i32) -> (i32, i32, i32) {
    %c0_i32 = arith.constant 0 : i32
    %c0_i32_0 = arith.constant 0 : i32
    %c0_i32_1 = arith.constant 0 : i32
    return %arg0, %c0_i32, %c0_i32_0 : i32, i32, i32
  }
}

</mosaic_0001>

<llo_original>
// kernel: tpu_custom_call.1
$region0: #{tpu_custom_call.1}
  #allocation0 [shape = 'u32[]', space=smem, size = 0x4, offset = 0x4, fixed_abs, tag = 'smem constant byte address 0x4 - core index']
  #allocation1 [shape = 'u32[144,128]{1,0:T(1,128)}', space=vmem, size = 0x12000, scoped, tag = 'internal scratch']
  #allocation2 [shape = 'f32[1,18,18,4]{3,2,1,0:T(8,128)}', space=vmem, size = 0x36000, scoped, tag = 'scratch operand']
  #allocation3 [shape = 'f32[1,18,16,4]{3,2,1,0:T(8,128)}', space=vmem, size = 0x24000, scoped, tag = 'scratch operand']
  %s0 = inlined_call_operand.vmem [shape: f32[2,16,16,4], index: 0, kind: input, shape index: {}]
  %s1 = inlined_call_operand.hbm [shape: f32[2,8,128], index: 1, kind: output, shape index: {}]
  %s2 = sld [smem:[#allocation0]]
  $region37: #{tpu_custom_call.1} parent=0
    _
  %s4 = ssub.s32 1, %s2
  %s5 = scalar_select 0, %s4, %s2
  $region1: #{tpu_custom_call.1} parent=0
    #allocation4 [shape = 'u8[8192]{0}', space=vmem, size = 0x2000, scoped, tag = 'output window, operand 0']
    #allocation5 [shape = 's32[2]{0}', space=sflag, size = 0x8, scoped, tag = 'scoped memory for tpu_custom_call.1']
    %6 = vsyncpa [#allocation5], 0
    %s7 = scalar_lea.sflag [#allocation5], 1
    %8 = vsyncpa %s7, 0
    loop: start=0, step=1, limit=4
    $region2: #{tpu_custom_call.1} parent=1 // loop_pre_header
      _
    $region3: #{tpu_custom_call.1} parent=1 // loop_header
      %s10 = sphi 0, %s14
      %p11 = scmp.ge.s32.totalorder %s10, 4
      %s20 = sphi 0, %s22
      %s23 = sphi 0, %s20
      %s24 = sphi 0, %s23
      %s40 = sphi 0, %s24
      %s46 = sphi 0, %s48
      %s49 = sphi 0, %s46
      %s50 = sphi 0, %s49
      %s66 = sphi 0, %s50
    $region4: #{tpu_custom_call.1} parent=1 // loop_header_branch
      %13 = sbr.rel (%p11) target = $region8
    $region5: #{tpu_custom_call.1} parent=1 // loop_body
      %s15 = ssub.s32 %s10, 1
      %s16 = ssub.s32 %s10, 2
      %s17 = sadd.s32 %s10, 1
      %s18 = ssub.s32 %s10, %s17
      %p19 = scmp.eq.s32.totalorder %s18, 0
      %s21 = sadd.s32 %s20, 1
      %s22 = scalar_select %p19, %s20, %s21
      %p25 = pneg %p19
      %p26 = scmp.eq.s32.totalorder %s10, 1
      %p27 = por %p25, %p26
      %p28 = scmp.ne.s32.totalorder %s20, %s23
      %p29 = scmp.eq.s32.totalorder %s10, 0
      %p30 = por %p28, %p29
      %p31 = scmp.ne.s32.totalorder %s20, %s23
      %p32 = scmp.eq.s32.totalorder %s15, 1
      %p33 = por %p31, %p32
      %p34 = scmp.ne.s32.totalorder %s23, %s24
      %p35 = scmp.eq.s32.totalorder %s15, 0
      %p36 = por %p34, %p35
      %p37 = scmp.ne.s32.totalorder %s23, %s24
      %p38 = scmp.eq.s32.totalorder %s16, 1
      %p39 = por %p37, %p38
      %p41 = scmp.ne.s32.totalorder %s24, %s40
      %p42 = scmp.eq.s32.totalorder %s16, 0
      %p43 = por %p41, %p42
      %s44 = ssub.s32 %s10, %s17
      %p45 = scmp.eq.s32.totalorder %s44, 0
      %s47 = sadd.s32 %s46, 1
      %s48 = scalar_select %p45, %s46, %s47
      %p51 = pneg %p45
      %p52 = scmp.eq.s32.totalorder %s10, 1
      %p53 = por %p51, %p52
      %p54 = scmp.ne.s32.totalorder %s46, %s49
      %p55 = scmp.eq.s32.totalorder %s10, 0
      %p56 = por %p54, %p55
      %p57 = scmp.ne.s32.totalorder %s46, %s49
      %p58 = scmp.eq.s32.totalorder %s15, 1
      %p59 = por %p57, %p58
      %p60 = scmp.ne.s32.totalorder %s49, %s50
      %p61 = scmp.eq.s32.totalorder %s15, 0
      %p62 = por %p60, %p61
      %p63 = scmp.ne.s32.totalorder %s49, %s50
      %p64 = scmp.eq.s32.totalorder %s16, 1
      %p65 = por %p63, %p64
      %p67 = scmp.ne.s32.totalorder %s50, %s66
      %p68 = scmp.eq.s32.totalorder %s16, 0
      %p69 = por %p67, %p68
      %p70 = scmp.le.s32.totalorder 1, %s10
      %p71 = scmp.lt.s32.totalorder %s10, 3
      %p72 = pnand %p70, %p71
      %p73 = pneg %p72
      // Predicated region
      $region9: #{tpu_custom_call.1} parent=5 // pred_check
        _
      $region10: #{tpu_custom_call.1} parent=5 // pred_check_branch
        %75 = sbr.rel (%p72) target = $region12
      $region11: #{tpu_custom_call.1} parent=5 // pred_region
        %s76 = ssub.s32 %s10, 1
      $region12: #{tpu_custom_call.1} parent=5 // pred_fallthru
        _
      %p77 = scmp.lt.s32.totalorder %s10, 2
      // Predicated region
      $region13: #{tpu_custom_call.1} parent=5 // pred_check
        %p78 = pneg %p77
      $region14: #{tpu_custom_call.1} parent=5 // pred_check_branch
        %80 = sbr.rel (%p78) target = $region16
      $region15: #{tpu_custom_call.1} parent=5 // pred_region
        // Predicated region
        $region17: #{tpu_custom_call.1} parent=15 // pred_check
          %p81 = pneg %p30
        $region18: #{tpu_custom_call.1} parent=15 // pred_check_branch
          %83 = sbr.rel (%p81) target = $region20
        $region19: #{tpu_custom_call.1} parent=15 // pred_region
          %p84 = scmp.lt.s32.totalorder %s10, 1
          %s85 = scalar_select %p84, %s10, 1
          %s86 = smul.addr %s85, 32
          %s87 = smul.addr %s86, 8
          %s88 = scalar_lea.vmem %s0, %s87
        $region20: #{tpu_custom_call.1} parent=15 // pred_fallthru
          _
      $region16: #{tpu_custom_call.1} parent=5 // pred_fallthru
        _
      %p89 = scmp.le.s32.totalorder 1, %s10
      %p90 = scmp.lt.s32.totalorder %s10, 3
      %p91 = pnand %p89, %p90
      %p92 = pneg %p91
      // Predicated region
      $region21: #{tpu_custom_call.1} parent=5 // pred_check
        _
      $region22: #{tpu_custom_call.1} parent=5 // pred_check_branch
        %94 = sbr.rel (%p91) target = $region24
      $region23: #{tpu_custom_call.1} parent=5 // pred_region
        %s95 = ssub.s32 %s10, 1
        %p96 = scmp.lt.s32.totalorder %s15, 1
        %s97 = scalar_select %p96, %s15, 1
        %s98 = smul.addr %s97, 32
        %s99 = smul.addr %s98, 8
        %s100 = scalar_lea.vmem %s0, %s99
        %p101 = pneg %p36
        %p102 = pneg %p33
        %p103 = pneg %p62
        %p104 = pneg %p59
        %s105 = sand.u32 %s49, 1
        %s106 = scalar_lea.sflag [#allocation5], %s105
        %s107 = sand.u32 %s49, 1
        %s108 = smul.addr %s107, 8
        %s109 = scalar_lea.vmem [#allocation4], %s108
        %p110 = scmp.lt.s32.totalorder %s15, 1
        %s111 = scalar_select %p110, %s15, 1
        %s112 = smul.addr %s111, 32
        %s113 = smul.addr %s112, 8
        %s114 = scalar_lea.vmem %s0, %s113
        %vm115 = vcmask 31744
        %116 = vst.msk [vmem:[#allocation2] sm:$0xff] %vm115, 0.0
        %117 = vst.msk [vmem:[#allocation2 + $0x8] sm:$0xff] %vm115, 0.0
        %vm118 = vcmask 25600
        %119 = vst.msk [vmem:[#allocation2 + $0x10] sm:$0x3] %vm118, 0.0
        %120 = vst.msk [vmem:[#allocation2 + $0x18] sm:$0xff] %vm115, 0.0
        %121 = vst.msk [vmem:[#allocation2 + $0x20] sm:$0xff] %vm115, 0.0
        %122 = vst.msk [vmem:[#allocation2 + $0x28] sm:$0x3] %vm118, 0.0
        %123 = vst.msk [vmem:[#allocation2 + $0x30] sm:$0xff] %vm115, 0.0
        %124 = vst.msk [vmem:[#allocation2 + $0x38] sm:$0xff] %vm115, 0.0
        %125 = vst.msk [vmem:[#allocation2 + $0x40] sm:$0x3] %vm118, 0.0
        %126 = vst.msk [vmem:[#allocation2 + $0x48] sm:$0xff] %vm115, 0.0
        %127 = vst.msk [vmem:[#allocation2 + $0x50] sm:$0xff] %vm115, 0.0
        %128 = vst.msk [vmem:[#allocation2 + $0x58] sm:$0x3] %vm118, 0.0
        %129 = vst.msk [vmem:[#allocation2 + $0x60] sm:$0xff] %vm115, 0.0
        %130 = vst.msk [vmem:[#allocation2 + $0x68] sm:$0xff] %vm115, 0.0
        %131 = vst.msk [vmem:[#allocation2 + $0x70] sm:$0x3] %vm118, 0.0
        %132 = vst.msk [vmem:[#allocation2 + $0x78] sm:$0xff] %vm115, 0.0
        %133 = vst.msk [vmem:[#allocation2 + $0x80] sm:$0xff] %vm115, 0.0
        %134 = vst.msk [vmem:[#allocation2 + $0x88] sm:$0x3] %vm118, 0.0
        %135 = vst.msk [vmem:[#allocation2 + $0x90] sm:$0xff] %vm115, 0.0
        %136 = vst.msk [vmem:[#allocation2 + $0x98] sm:$0xff] %vm115, 0.0
        %137 = vst.msk [vmem:[#allocation2 + $0xa0] sm:$0x3] %vm118, 0.0
        %138 = vst.msk [vmem:[#allocation2 + $0xa8] sm:$0xff] %vm115, 0.0
        %139 = vst.msk [vmem:[#allocation2 + $0xb0] sm:$0xff] %vm115, 0.0
        %140 = vst.msk [vmem:[#allocation2 + $0xb8] sm:$0x3] %vm118, 0.0
        %141 = vst.msk [vmem:[#allocation2 + $0xc0] sm:$0xff] %vm115, 0.0
        %142 = vst.msk [vmem:[#allocation2 + $0xc8] sm:$0xff] %vm115, 0.0
        %143 = vst.msk [vmem:[#allocation2 + $0xd0] sm:$0x3] %vm118, 0.0
        %144 = vst.msk [vmem:[#allocation2 + $0xd8] sm:$0xff] %vm115, 0.0
        %145 = vst.msk [vmem:[#allocation2 + $0xe0] sm:$0xff] %vm115, 0.0
        %146 = vst.msk [vmem:[#allocation2 + $0xe8] sm:$0x3] %vm118, 0.0
        %147 = vst.msk [vmem:[#allocation2 + $0xf0] sm:$0xff] %vm115, 0.0
        %148 = vst.msk [vmem:[#allocation2 + $0xf8] sm:$0xff] %vm115, 0.0
        %149 = vst.msk [vmem:[#allocation2 + $0x100] sm:$0x3] %vm118, 0.0
        %150 = vst.msk [vmem:[#allocation2 + $0x108] sm:$0xff] %vm115, 0.0
        %151 = vst.msk [vmem:[#allocation2 + $0x110] sm:$0xff] %vm115, 0.0
        %152 = vst.msk [vmem:[#allocation2 + $0x118] sm:$0x3] %vm118, 0.0
        %153 = vst.msk [vmem:[#allocation2 + $0x120] sm:$0xff] %vm115, 0.0
        %154 = vst.msk [vmem:[#allocation2 + $0x128] sm:$0xff] %vm115, 0.0
        %155 = vst.msk [vmem:[#allocation2 + $0x130] sm:$0x3] %vm118, 0.0
        %156 = vst.msk [vmem:[#allocation2 + $0x138] sm:$0xff] %vm115, 0.0
        %157 = vst.msk [vmem:[#allocation2 + $0x140] sm:$0xff] %vm115, 0.0
        %158 = vst.msk [vmem:[#allocation2 + $0x148] sm:$0x3] %vm118, 0.0
        %159 = vst.msk [vmem:[#allocation2 + $0x150] sm:$0xff] %vm115, 0.0
        %160 = vst.msk [vmem:[#allocation2 + $0x158] sm:$0xff] %vm115, 0.0
        %161 = vst.msk [vmem:[#allocation2 + $0x160] sm:$0x3] %vm118, 0.0
        %162 = vst.msk [vmem:[#allocation2 + $0x168] sm:$0xff] %vm115, 0.0
        %163 = vst.msk [vmem:[#allocation2 + $0x170] sm:$0xff] %vm115, 0.0
        %164 = vst.msk [vmem:[#allocation2 + $0x178] sm:$0x3] %vm118, 0.0
        %165 = vst.msk [vmem:[#allocation2 + $0x180] sm:$0xff] %vm115, 0.0
        %166 = vst.msk [vmem:[#allocation2 + $0x188] sm:$0xff] %vm115, 0.0
        %167 = vst.msk [vmem:[#allocation2 + $0x190] sm:$0x3] %vm118, 0.0
        %168 = vst.msk [vmem:[#allocation2 + $0x198] sm:$0xff] %vm115, 0.0
        %169 = vst.msk [vmem:[#allocation2 + $0x1a0] sm:$0xff] %vm115, 0.0
        %170 = vst.msk [vmem:[#allocation2 + $0x1a8] sm:$0x3] %vm118, 0.0
        %v171 = vld [vmem:[%s114] sm:$0xff]
        %v172 = vld [vmem:[%s114 + $0x8] sm:$0xff]
        %v173 = vld [vmem:[%s114 + $0x10] sm:$0xff]
        %v174 = vld [vmem:[%s114 + $0x18] sm:$0xff]
        %v175 = vld [vmem:[%s114 + $0x20] sm:$0xff]
        %v176 = vld [vmem:[%s114 + $0x28] sm:$0xff]
        %v177 = vld [vmem:[%s114 + $0x30] sm:$0xff]
        %v178 = vld [vmem:[%s114 + $0x38] sm:$0xff]
        %v179 = vld [vmem:[%s114 + $0x40] sm:$0xff]
        %v180 = vld [vmem:[%s114 + $0x48] sm:$0xff]
        %v181 = vld [vmem:[%s114 + $0x50] sm:$0xff]
        %v182 = vld [vmem:[%s114 + $0x58] sm:$0xff]
        %v183 = vld [vmem:[%s114 + $0x60] sm:$0xff]
        %v184 = vld [vmem:[%s114 + $0x68] sm:$0xff]
        %v185 = vld [vmem:[%s114 + $0x70] sm:$0xff]
        %v186 = vld [vmem:[%s114 + $0x78] sm:$0xff]
        %v187 = vld [vmem:[%s114 + $0x80] sm:$0xff]
        %v188 = vld [vmem:[%s114 + $0x88] sm:$0xff]
        %v189 = vld [vmem:[%s114 + $0x90] sm:$0xff]
        %v190 = vld [vmem:[%s114 + $0x98] sm:$0xff]
        %v191 = vld [vmem:[%s114 + $0xa0] sm:$0xff]
        %v192 = vld [vmem:[%s114 + $0xa8] sm:$0xff]
        %v193 = vld [vmem:[%s114 + $0xb0] sm:$0xff]
        %v194 = vld [vmem:[%s114 + $0xb8] sm:$0xff]
        %v195 = vld [vmem:[%s114 + $0xc0] sm:$0xff]
        %v196 = vld [vmem:[%s114 + $0xc8] sm:$0xff]
        %v197 = vld [vmem:[%s114 + $0xd0] sm:$0xff]
        %v198 = vld [vmem:[%s114 + $0xd8] sm:$0xff]
        %v199 = vld [vmem:[%s114 + $0xe0] sm:$0xff]
        %v200 = vld [vmem:[%s114 + $0xe8] sm:$0xff]
        %v201 = vld [vmem:[%s114 + $0xf0] sm:$0xff]
        %v202 = vld [vmem:[%s114 + $0xf8] sm:$0xff]
        %s203 = scalar_lea.vmem [#allocation2], 24
        %204 = vst.msk [vmem:[%s203 + $0x1] sm:$0xff] %vm115, %v171
        %205 = vst.msk [vmem:[%s203 + $0x9] sm:$0xff] %vm115, %v172
        %206 = vst.msk [vmem:[%s203 + $0x19] sm:$0xff] %vm115, %v173
        %207 = vst.msk [vmem:[%s203 + $0x21] sm:$0xff] %vm115, %v174
        %208 = vst.msk [vmem:[%s203 + $0x31] sm:$0xff] %vm115, %v175
        %209 = vst.msk [vmem:[%s203 + $0x39] sm:$0xff] %vm115, %v176
        %210 = vst.msk [vmem:[%s203 + $0x49] sm:$0xff] %vm115, %v177
        %211 = vst.msk [vmem:[%s203 + $0x51] sm:$0xff] %vm115, %v178
        %212 = vst.msk [vmem:[%s203 + $0x61] sm:$0xff] %vm115, %v179
        %213 = vst.msk [vmem:[%s203 + $0x69] sm:$0xff] %vm115, %v180
        %214 = vst.msk [vmem:[%s203 + $0x79] sm:$0xff] %vm115, %v181
        %215 = vst.msk [vmem:[%s203 + $0x81] sm:$0xff] %vm115, %v182
        %216 = vst.msk [vmem:[%s203 + $0x91] sm:$0xff] %vm115, %v183
        %217 = vst.msk [vmem:[%s203 + $0x99] sm:$0xff] %vm115, %v184
        %218 = vst.msk [vmem:[%s203 + $0xa9] sm:$0xff] %vm115, %v185
        %219 = vst.msk [vmem:[%s203 + $0xb1] sm:$0xff] %vm115, %v186
        %220 = vst.msk [vmem:[%s203 + $0xc1] sm:$0xff] %vm115, %v187
        %221 = vst.msk [vmem:[%s203 + $0xc9] sm:$0xff] %vm115, %v188
        %222 = vst.msk [vmem:[%s203 + $0xd9] sm:$0xff] %vm115, %v189
        %223 = vst.msk [vmem:[%s203 + $0xe1] sm:$0xff] %vm115, %v190
        %224 = vst.msk [vmem:[%s203 + $0xf1] sm:$0xff] %vm115, %v191
        %225 = vst.msk [vmem:[%s203 + $0xf9] sm:$0xff] %vm115, %v192
        %226 = vst.msk [vmem:[%s203 + $0x109] sm:$0xff] %vm115, %v193
        %227 = vst.msk [vmem:[%s203 + $0x111] sm:$0xff] %vm115, %v194
        %228 = vst.msk [vmem:[%s203 + $0x121] sm:$0xff] %vm115, %v195
        %229 = vst.msk [vmem:[%s203 + $0x129] sm:$0xff] %vm115, %v196
        %230 = vst.msk [vmem:[%s203 + $0x139] sm:$0xff] %vm115, %v197
        %231 = vst.msk [vmem:[%s203 + $0x141] sm:$0xff] %vm115, %v198
        %232 = vst.msk [vmem:[%s203 + $0x151] sm:$0xff] %vm115, %v199
        %233 = vst.msk [vmem:[%s203 + $0x159] sm:$0xff] %vm115, %v200
        %234 = vst.msk [vmem:[%s203 + $0x169] sm:$0xff] %vm115, %v201
        %235 = vst.msk [vmem:[%s203 + $0x171] sm:$0xff] %vm115, %v202
        %v236 = vld [vmem:[#allocation2] sm:$0xff]
        %v237 = vld [vmem:[#allocation2 + $0x8] sm:$0xff]
        %v238 = vld [vmem:[#allocation2 + $0x18] sm:$0xff]
        %v239 = vld [vmem:[#allocation2 + $0x20] sm:$0xff]
        %v240 = vld [vmem:[#allocation2 + $0x30] sm:$0xff]
        %v241 = vld [vmem:[#allocation2 + $0x38] sm:$0xff]
        %v242 = vld [vmem:[#allocation2 + $0x48] sm:$0xff]
        %v243 = vld [vmem:[#allocation2 + $0x50] sm:$0xff]
        %v244 = vld [vmem:[#allocation2 + $0x60] sm:$0xff]
        %v245 = vld [vmem:[#allocation2 + $0x68] sm:$0xff]
        %v246 = vld [vmem:[#allocation2 + $0x78] sm:$0xff]
        %v247 = vld [vmem:[#allocation2 + $0x80] sm:$0xff]
        %v248 = vld [vmem:[#allocation2 + $0x90] sm:$0xff]
        %v249 = vld [vmem:[#allocation2 + $0x98] sm:$0xff]
        %v250 = vld [vmem:[#allocation2 + $0xa8] sm:$0xff]
        %v251 = vld [vmem:[#allocation2 + $0xb0] sm:$0xff]
        %v252 = vld [vmem:[#allocation2 + $0xc0] sm:$0xff]
        %v253 = vld [vmem:[#allocation2 + $0xc8] sm:$0xff]
        %v254 = vld [vmem:[#allocation2 + $0xd8] sm:$0xff]
        %v255 = vld [vmem:[#allocation2 + $0xe0] sm:$0xff]
        %v256 = vld [vmem:[#allocation2 + $0xf0] sm:$0xff]
        %v257 = vld [vmem:[#allocation2 + $0xf8] sm:$0xff]
        %v258 = vld [vmem:[#allocation2 + $0x108] sm:$0xff]
        %v259 = vld [vmem:[#allocation2 + $0x110] sm:$0xff]
        %v260 = vld [vmem:[#allocation2 + $0x120] sm:$0xff]
        %v261 = vld [vmem:[#allocation2 + $0x128] sm:$0xff]
        %v262 = vld [vmem:[#allocation2 + $0x138] sm:$0xff]
        %v263 = vld [vmem:[#allocation2 + $0x140] sm:$0xff]
        %v264 = vld [vmem:[#allocation2 + $0x150] sm:$0xff]
        %v265 = vld [vmem:[#allocation2 + $0x158] sm:$0xff]
        %v266 = vld [vmem:[#allocation2 + $0x168] sm:$0xff]
        %v267 = vld [vmem:[#allocation2 + $0x170] sm:$0xff]
        %v268 = vld [vmem:[#allocation2 + $0x180] sm:$0xff]
        %v269 = vld [vmem:[#allocation2 + $0x188] sm:$0xff]
        %v270 = vld [vmem:[#allocation2 + $0x198] sm:$0xff]
        %v271 = vld [vmem:[#allocation2 + $0x1a0] sm:$0xff]
        %v272 = vld [vmem:[#allocation2 + $0x1] sm:$0xff]
        %v273 = vld [vmem:[#allocation2 + $0x9] sm:$0xff]
        %v274 = vld [vmem:[#allocation2 + $0x19] sm:$0xff]
        %v275 = vld [vmem:[#allocation2 + $0x21] sm:$0xff]
        %v276 = vld [vmem:[#allocation2 + $0x31] sm:$0xff]
        %v277 = vld [vmem:[#allocation2 + $0x39] sm:$0xff]
        %v278 = vld [vmem:[#allocation2 + $0x49] sm:$0xff]
        %v279 = vld [vmem:[#allocation2 + $0x51] sm:$0xff]
        %v280 = vld [vmem:[#allocation2 + $0x61] sm:$0xff]
        %v281 = vld [vmem:[#allocation2 + $0x69] sm:$0xff]
        %v282 = vld [vmem:[#allocation2 + $0x79] sm:$0xff]
        %v283 = vld [vmem:[#allocation2 + $0x81] sm:$0xff]
        %v284 = vld [vmem:[#allocation2 + $0x91] sm:$0xff]
        %v285 = vld [vmem:[#allocation2 + $0x99] sm:$0xff]
        %v286 = vld [vmem:[#allocation2 + $0xa9] sm:$0xff]
        %v287 = vld [vmem:[#allocation2 + $0xb1] sm:$0xff]
        %v288 = vld [vmem:[#allocation2 + $0xc1] sm:$0xff]
        %v289 = vld [vmem:[#allocation2 + $0xc9] sm:$0xff]
        %v290 = vld [vmem:[#allocation2 + $0xd9] sm:$0xff]
        %v291 = vld [vmem:[#allocation2 + $0xe1] sm:$0xff]
        %v292 = vld [vmem:[#allocation2 + $0xf1] sm:$0xff]
        %v293 = vld [vmem:[#allocation2 + $0xf9] sm:$0xff]
        %v294 = vld [vmem:[#allocation2 + $0x109] sm:$0xff]
        %v295 = vld [vmem:[#allocation2 + $0x111] sm:$0xff]
        %v296 = vld [vmem:[#allocation2 + $0x121] sm:$0xff]
        %v297 = vld [vmem:[#allocation2 + $0x129] sm:$0xff]
        %v298 = vld [vmem:[#allocation2 + $0x139] sm:$0xff]
        %v299 = vld [vmem:[#allocation2 + $0x141] sm:$0xff]
        %v300 = vld [vmem:[#allocation2 + $0x151] sm:$0xff]
        %v301 = vld [vmem:[#allocation2 + $0x159] sm:$0xff]
        %v302 = vld [vmem:[#allocation2 + $0x169] sm:$0xff]
        %v303 = vld [vmem:[#allocation2 + $0x171] sm:$0xff]
        %v304 = vld [vmem:[#allocation2 + $0x181] sm:$0xff]
        %v305 = vld [vmem:[#allocation2 + $0x189] sm:$0xff]
        %v306 = vld [vmem:[#allocation2 + $0x199] sm:$0xff]
        %v307 = vld [vmem:[#allocation2 + $0x1a1] sm:$0xff]
        %v308 = vmax.f32 %v236, %v272
        %v309 = vmax.f32 %v237, %v273
        %v310 = vmax.f32 %v238, %v274
        %v311 = vmax.f32 %v239, %v275
        %v312 = vmax.f32 %v240, %v276
        %v313 = vmax.f32 %v241, %v277
        %v314 = vmax.f32 %v242, %v278
        %v315 = vmax.f32 %v243, %v279
        %v316 = vmax.f32 %v244, %v280
        %v317 = vmax.f32 %v245, %v281
        %v318 = vmax.f32 %v246, %v282
        %v319 = vmax.f32 %v247, %v283
        %v320 = vmax.f32 %v248, %v284
        %v321 = vmax.f32 %v249, %v285
        %v322 = vmax.f32 %v250, %v286
        %v323 = vmax.f32 %v251, %v287
        %v324 = vmax.f32 %v252, %v288
        %v325 = vmax.f32 %v253, %v289
        %v326 = vmax.f32 %v254, %v290
        %v327 = vmax.f32 %v255, %v291
        %v328 = vmax.f32 %v256, %v292
        %v329 = vmax.f32 %v257, %v293
        %v330 = vmax.f32 %v258, %v294
        %v331 = vmax.f32 %v259, %v295
        %v332 = vmax.f32 %v260, %v296
        %v333 = vmax.f32 %v261, %v297
        %v334 = vmax.f32 %v262, %v298
        %v335 = vmax.f32 %v263, %v299
        %v336 = vmax.f32 %v264, %v300
        %v337 = vmax.f32 %v265, %v301
        %v338 = vmax.f32 %v266, %v302
        %v339 = vmax.f32 %v267, %v303
        %v340 = vmax.f32 %v268, %v304
        %v341 = vmax.f32 %v269, %v305
        %v342 = vmax.f32 %v270, %v306
        %v343 = vmax.f32 %v271, %v307
        %v344 = vld [vmem:[#allocation2 + $0x2] sm:$0xff]
        %v345 = vld [vmem:[#allocation2 + $0xa] sm:$0xff]
        %v346 = vld [vmem:[#allocation2 + $0x1a] sm:$0xff]
        %v347 = vld [vmem:[#allocation2 + $0x22] sm:$0xff]
        %v348 = vld [vmem:[#allocation2 + $0x32] sm:$0xff]
        %v349 = vld [vmem:[#allocation2 + $0x3a] sm:$0xff]
        %v350 = vld [vmem:[#allocation2 + $0x4a] sm:$0xff]
        %v351 = vld [vmem:[#allocation2 + $0x52] sm:$0xff]
        %v352 = vld [vmem:[#allocation2 + $0x62] sm:$0xff]
        %v353 = vld [vmem:[#allocation2 + $0x6a] sm:$0xff]
        %v354 = vld [vmem:[#allocation2 + $0x7a] sm:$0xff]
        %v355 = vld [vmem:[#allocation2 + $0x82] sm:$0xff]
        %v356 = vld [vmem:[#allocation2 + $0x92] sm:$0xff]
        %v357 = vld [vmem:[#allocation2 + $0x9a] sm:$0xff]
        %v358 = vld [vmem:[#allocation2 + $0xaa] sm:$0xff]
        %v359 = vld [vmem:[#allocation2 + $0xb2] sm:$0xff]
        %v360 = vld [vmem:[#allocation2 + $0xc2] sm:$0xff]
        %v361 = vld [vmem:[#allocation2 + $0xca] sm:$0xff]
        %v362 = vld [vmem:[#allocation2 + $0xda] sm:$0xff]
        %v363 = vld [vmem:[#allocation2 + $0xe2] sm:$0xff]
        %v364 = vld [vmem:[#allocation2 + $0xf2] sm:$0xff]
        %v365 = vld [vmem:[#allocation2 + $0xfa] sm:$0xff]
        %v366 = vld [vmem:[#allocation2 + $0x10a] sm:$0xff]
        %v367 = vld [vmem:[#allocation2 + $0x112] sm:$0xff]
        %v368 = vld [vmem:[#allocation2 + $0x122] sm:$0xff]
        %v369 = vld [vmem:[#allocation2 + $0x12a] sm:$0xff]
        %v370 = vld [vmem:[#allocation2 + $0x13a] sm:$0xff]
        %v371 = vld [vmem:[#allocation2 + $0x142] sm:$0xff]
        %v372 = vld [vmem:[#allocation2 + $0x152] sm:$0xff]
        %v373 = vld [vmem:[#allocation2 + $0x15a] sm:$0xff]
        %v374 = vld [vmem:[#allocation2 + $0x16a] sm:$0xff]
        %v375 = vld [vmem:[#allocation2 + $0x172] sm:$0xff]
        %v376 = vld [vmem:[#allocation2 + $0x182] sm:$0xff]
        %v377 = vld [vmem:[#allocation2 + $0x18a] sm:$0xff]
        %v378 = vld [vmem:[#allocation2 + $0x19a] sm:$0xff]
        %v379 = vld [vmem:[#allocation2 + $0x1a2] sm:$0xff]
        %v380 = vmax.f32 %v308, %v344
        %v381 = vmax.f32 %v309, %v345
        %v382 = vmax.f32 %v310, %v346
        %v383 = vmax.f32 %v311, %v347
        %v384 = vmax.f32 %v312, %v348
        %v385 = vmax.f32 %v313, %v349
        %v386 = vmax.f32 %v314, %v350
        %v387 = vmax.f32 %v315, %v351
        %v388 = vmax.f32 %v316, %v352
        %v389 = vmax.f32 %v317, %v353
        %v390 = vmax.f32 %v318, %v354
        %v391 = vmax.f32 %v319, %v355
        %v392 = vmax.f32 %v320, %v356
        %v393 = vmax.f32 %v321, %v357
        %v394 = vmax.f32 %v322, %v358
        %v395 = vmax.f32 %v323, %v359
        %v396 = vmax.f32 %v324, %v360
        %v397 = vmax.f32 %v325, %v361
        %v398 = vmax.f32 %v326, %v362
        %v399 = vmax.f32 %v327, %v363
        %v400 = vmax.f32 %v328, %v364
        %v401 = vmax.f32 %v329, %v365
        %v402 = vmax.f32 %v330, %v366
        %v403 = vmax.f32 %v331, %v367
        %v404 = vmax.f32 %v332, %v368
        %v405 = vmax.f32 %v333, %v369
        %v406 = vmax.f32 %v334, %v370
        %v407 = vmax.f32 %v335, %v371
        %v408 = vmax.f32 %v336, %v372
        %v409 = vmax.f32 %v337, %v373
        %v410 = vmax.f32 %v338, %v374
        %v411 = vmax.f32 %v339, %v375
        %v412 = vmax.f32 %v340, %v376
        %v413 = vmax.f32 %v341, %v377
        %v414 = vmax.f32 %v342, %v378
        %v415 = vmax.f32 %v343, %v379
        %416 = vst.msk [vmem:[#allocation3] sm:$0xff] %vm115, %v380
        %417 = vst.msk [vmem:[#allocation3 + $0x8] sm:$0xff] %vm115, %v381
        %418 = vst.msk [vmem:[#allocation3 + $0x10] sm:$0xff] %vm115, %v382
        %419 = vst.msk [vmem:[#allocation3 + $0x18] sm:$0xff] %vm115, %v383
        %420 = vst.msk [vmem:[#allocation3 + $0x20] sm:$0xff] %vm115, %v384
        %421 = vst.msk [vmem:[#allocation3 + $0x28] sm:$0xff] %vm115, %v385
        %422 = vst.msk [vmem:[#allocation3 + $0x30] sm:$0xff] %vm115, %v386
        %423 = vst.msk [vmem:[#allocation3 + $0x38] sm:$0xff] %vm115, %v387
        %424 = vst.msk [vmem:[#allocation3 + $0x40] sm:$0xff] %vm115, %v388
        %425 = vst.msk [vmem:[#allocation3 + $0x48] sm:$0xff] %vm115, %v389
        %426 = vst.msk [vmem:[#allocation3 + $0x50] sm:$0xff] %vm115, %v390
        %427 = vst.msk [vmem:[#allocation3 + $0x58] sm:$0xff] %vm115, %v391
        %428 = vst.msk [vmem:[#allocation3 + $0x60] sm:$0xff] %vm115, %v392
        %429 = vst.msk [vmem:[#allocation3 + $0x68] sm:$0xff] %vm115, %v393
        %430 = vst.msk [vmem:[#allocation3 + $0x70] sm:$0xff] %vm115, %v394
        %431 = vst.msk [vmem:[#allocation3 + $0x78] sm:$0xff] %vm115, %v395
        %432 = vst.msk [vmem:[#allocation3 + $0x80] sm:$0xff] %vm115, %v396
        %433 = vst.msk [vmem:[#allocation3 + $0x88] sm:$0xff] %vm115, %v397
        %434 = vst.msk [vmem:[#allocation3 + $0x90] sm:$0xff] %vm115, %v398
        %435 = vst.msk [vmem:[#allocation3 + $0x98] sm:$0xff] %vm115, %v399
        %436 = vst.msk [vmem:[#allocation3 + $0xa0] sm:$0xff] %vm115, %v400
        %437 = vst.msk [vmem:[#allocation3 + $0xa8] sm:$0xff] %vm115, %v401
        %438 = vst.msk [vmem:[#allocation3 + $0xb0] sm:$0xff] %vm115, %v402
        %439 = vst.msk [vmem:[#allocation3 + $0xb8] sm:$0xff] %vm115, %v403
        %440 = vst.msk [vmem:[#allocation3 + $0xc0] sm:$0xff] %vm115, %v404
        %441 = vst.msk [vmem:[#allocation3 + $0xc8] sm:$0xff] %vm115, %v405
        %442 = vst.msk [vmem:[#allocation3 + $0xd0] sm:$0xff] %vm115, %v406
        %443 = vst.msk [vmem:[#allocation3 + $0xd8] sm:$0xff] %vm115, %v407
        %444 = vst.msk [vmem:[#allocation3 + $0xe0] sm:$0xff] %vm115, %v408
        %445 = vst.msk [vmem:[#allocation3 + $0xe8] sm:$0xff] %vm115, %v409
        %446 = vst.msk [vmem:[#allocation3 + $0xf0] sm:$0xff] %vm115, %v410
        %447 = vst.msk [vmem:[#allocation3 + $0xf8] sm:$0xff] %vm115, %v411
        %448 = vst.msk [vmem:[#allocation3 + $0x100] sm:$0xff] %vm115, %v412
        %449 = vst.msk [vmem:[#allocation3 + $0x108] sm:$0xff] %vm115, %v413
        %450 = vst.msk [vmem:[#allocation3 + $0x110] sm:$0xff] %vm115, %v414
        %451 = vst.msk [vmem:[#allocation3 + $0x118] sm:$0xff] %vm115, %v415
        %v452 = vld [vmem:[#allocation3] sm:$0xff]
        %v453 = vld [vmem:[#allocation3 + $0x8] sm:$0xff]
        %v454 = vld [vmem:[#allocation3 + $0x10] sm:$0xff]
        %v455 = vld [vmem:[#allocation3 + $0x18] sm:$0xff]
        %v456 = vld [vmem:[#allocation3 + $0x20] sm:$0xff]
        %v457 = vld [vmem:[#allocation3 + $0x28] sm:$0xff]
        %v458 = vld [vmem:[#allocation3 + $0x30] sm:$0xff]
        %v459 = vld [vmem:[#allocation3 + $0x38] sm:$0xff]
        %v460 = vld [vmem:[#allocation3 + $0x40] sm:$0xff]
        %v461 = vld [vmem:[#allocation3 + $0x48] sm:$0xff]
        %v462 = vld [vmem:[#allocation3 + $0x50] sm:$0xff]
        %v463 = vld [vmem:[#allocation3 + $0x58] sm:$0xff]
        %v464 = vld [vmem:[#allocation3 + $0x60] sm:$0xff]
        %v465 = vld [vmem:[#allocation3 + $0x68] sm:$0xff]
        %v466 = vld [vmem:[#allocation3 + $0x70] sm:$0xff]
        %v467 = vld [vmem:[#allocation3 + $0x78] sm:$0xff]
        %v468 = vld [vmem:[#allocation3 + $0x80] sm:$0xff]
        %v469 = vld [vmem:[#allocation3 + $0x88] sm:$0xff]
        %v470 = vld [vmem:[#allocation3 + $0x90] sm:$0xff]
        %v471 = vld [vmem:[#allocation3 + $0x98] sm:$0xff]
        %v472 = vld [vmem:[#allocation3 + $0xa0] sm:$0xff]
        %v473 = vld [vmem:[#allocation3 + $0xa8] sm:$0xff]
        %v474 = vld [vmem:[#allocation3 + $0xb0] sm:$0xff]
        %v475 = vld [vmem:[#allocation3 + $0xb8] sm:$0xff]
        %v476 = vld [vmem:[#allocation3 + $0xc0] sm:$0xff]
        %v477 = vld [vmem:[#allocation3 + $0xc8] sm:$0xff]
        %v478 = vld [vmem:[#allocation3 + $0xd0] sm:$0xff]
        %v479 = vld [vmem:[#allocation3 + $0xd8] sm:$0xff]
        %v480 = vld [vmem:[#allocation3 + $0xe0] sm:$0xff]
        %v481 = vld [vmem:[#allocation3 + $0xe8] sm:$0xff]
        %v482 = vld [vmem:[#allocation3 + $0xf0] sm:$0xff]
        %v483 = vld [vmem:[#allocation3 + $0xf8] sm:$0xff]
        %s484 = scalar_lea.vmem [#allocation3], 16
        %v485 = vld [vmem:[%s484] sm:$0xff]
        %v486 = vld [vmem:[%s484 + $0x8] sm:$0xff]
        %v487 = vld [vmem:[%s484 + $0x10] sm:$0xff]
        %v488 = vld [vmem:[%s484 + $0x18] sm:$0xff]
        %v489 = vld [vmem:[%s484 + $0x20] sm:$0xff]
        %v490 = vld [vmem:[%s484 + $0x28] sm:$0xff]
        %v491 = vld [vmem:[%s484 + $0x30] sm:$0xff]
        %v492 = vld [vmem:[%s484 + $0x38] sm:$0xff]
        %v493 = vld [vmem:[%s484 + $0x40] sm:$0xff]
        %v494 = vld [vmem:[%s484 + $0x48] sm:$0xff]
        %v495 = vld [vmem:[%s484 + $0x50] sm:$0xff]
        %v496 = vld [vmem:[%s484 + $0x58] sm:$0xff]
        %v497 = vld [vmem:[%s484 + $0x60] sm:$0xff]
        %v498 = vld [vmem:[%s484 + $0x68] sm:$0xff]
        %v499 = vld [vmem:[%s484 + $0x70] sm:$0xff]
        %v500 = vld [vmem:[%s484 + $0x78] sm:$0xff]
        %v501 = vld [vmem:[%s484 + $0x80] sm:$0xff]
        %v502 = vld [vmem:[%s484 + $0x88] sm:$0xff]
        %v503 = vld [vmem:[%s484 + $0x90] sm:$0xff]
        %v504 = vld [vmem:[%s484 + $0x98] sm:$0xff]
        %v505 = vld [vmem:[%s484 + $0xa0] sm:$0xff]
        %v506 = vld [vmem:[%s484 + $0xa8] sm:$0xff]
        %v507 = vld [vmem:[%s484 + $0xb0] sm:$0xff]
        %v508 = vld [vmem:[%s484 + $0xb8] sm:$0xff]
        %v509 = vld [vmem:[%s484 + $0xc0] sm:$0xff]
        %v510 = vld [vmem:[%s484 + $0xc8] sm:$0xff]
        %v511 = vld [vmem:[%s484 + $0xd0] sm:$0xff]
        %v512 = vld [vmem:[%s484 + $0xd8] sm:$0xff]
        %v513 = vld [vmem:[%s484 + $0xe0] sm:$0xff]
        %v514 = vld [vmem:[%s484 + $0xe8] sm:$0xff]
        %v515 = vld [vmem:[%s484 + $0xf0] sm:$0xff]
        %v516 = vld [vmem:[%s484 + $0xf8] sm:$0xff]
        %v517 = vmax.f32 %v452, %v485
        %v518 = vmax.f32 %v453, %v486
        %v519 = vmax.f32 %v454, %v487
        %v520 = vmax.f32 %v455, %v488
        %v521 = vmax.f32 %v456, %v489
        %v522 = vmax.f32 %v457, %v490
        %v523 = vmax.f32 %v458, %v491
        %v524 = vmax.f32 %v459, %v492
        %v525 = vmax.f32 %v460, %v493
        %v526 = vmax.f32 %v461, %v494
        %v527 = vmax.f32 %v462, %v495
        %v528 = vmax.f32 %v463, %v496
        %v529 = vmax.f32 %v464, %v497
        %v530 = vmax.f32 %v465, %v498
        %v531 = vmax.f32 %v466, %v499
        %v532 = vmax.f32 %v467, %v500
        %v533 = vmax.f32 %v468, %v501
        %v534 = vmax.f32 %v469, %v502
        %v535 = vmax.f32 %v470, %v503
        %v536 = vmax.f32 %v471, %v504
        %v537 = vmax.f32 %v472, %v505
        %v538 = vmax.f32 %v473, %v506
        %v539 = vmax.f32 %v474, %v507
        %v540 = vmax.f32 %v475, %v508
        %v541 = vmax.f32 %v476, %v509
        %v542 = vmax.f32 %v477, %v510
        %v543 = vmax.f32 %v478, %v511
        %v544 = vmax.f32 %v479, %v512
        %v545 = vmax.f32 %v480, %v513
        %v546 = vmax.f32 %v481, %v514
        %v547 = vmax.f32 %v482, %v515
        %v548 = vmax.f32 %v483, %v516
        %s549 = scalar_lea.vmem [#allocation3], 32
        %v550 = vld [vmem:[%s549] sm:$0xff]
        %v551 = vld [vmem:[%s549 + $0x8] sm:$0xff]
        %v552 = vld [vmem:[%s549 + $0x10] sm:$0xff]
        %v553 = vld [vmem:[%s549 + $0x18] sm:$0xff]
        %v554 = vld [vmem:[%s549 + $0x20] sm:$0xff]
        %v555 = vld [vmem:[%s549 + $0x28] sm:$0xff]
        %v556 = vld [vmem:[%s549 + $0x30] sm:$0xff]
        %v557 = vld [vmem:[%s549 + $0x38] sm:$0xff]
        %v558 = vld [vmem:[%s549 + $0x40] sm:$0xff]
        %v559 = vld [vmem:[%s549 + $0x48] sm:$0xff]
        %v560 = vld [vmem:[%s549 + $0x50] sm:$0xff]
        %v561 = vld [vmem:[%s549 + $0x58] sm:$0xff]
        %v562 = vld [vmem:[%s549 + $0x60] sm:$0xff]
        %v563 = vld [vmem:[%s549 + $0x68] sm:$0xff]
        %v564 = vld [vmem:[%s549 + $0x70] sm:$0xff]
        %v565 = vld [vmem:[%s549 + $0x78] sm:$0xff]
        %v566 = vld [vmem:[%s549 + $0x80] sm:$0xff]
        %v567 = vld [vmem:[%s549 + $0x88] sm:$0xff]
        %v568 = vld [vmem:[%s549 + $0x90] sm:$0xff]
        %v569 = vld [vmem:[%s549 + $0x98] sm:$0xff]
        %v570 = vld [vmem:[%s549 + $0xa0] sm:$0xff]
        %v571 = vld [vmem:[%s549 + $0xa8] sm:$0xff]
        %v572 = vld [vmem:[%s549 + $0xb0] sm:$0xff]
        %v573 = vld [vmem:[%s549 + $0xb8] sm:$0xff]
        %v574 = vld [vmem:[%s549 + $0xc0] sm:$0xff]
        %v575 = vld [vmem:[%s549 + $0xc8] sm:$0xff]
        %v576 = vld [vmem:[%s549 + $0xd0] sm:$0xff]
        %v577 = vld [vmem:[%s549 + $0xd8] sm:$0xff]
        %v578 = vld [vmem:[%s549 + $0xe0] sm:$0xff]
        %v579 = vld [vmem:[%s549 + $0xe8] sm:$0xff]
        %v580 = vld [vmem:[%s549 + $0xf0] sm:$0xff]
        %v581 = vld [vmem:[%s549 + $0xf8] sm:$0xff]
        %v582 = vmax.f32 %v517, %v550
        %v583 = vmax.f32 %v518, %v551
        %v584 = vmax.f32 %v519, %v552
        %v585 = vmax.f32 %v520, %v553
        %v586 = vmax.f32 %v521, %v554
        %v587 = vmax.f32 %v522, %v555
        %v588 = vmax.f32 %v523, %v556
        %v589 = vmax.f32 %v524, %v557
        %v590 = vmax.f32 %v525, %v558
        %v591 = vmax.f32 %v526, %v559
        %v592 = vmax.f32 %v527, %v560
        %v593 = vmax.f32 %v528, %v561
        %v594 = vmax.f32 %v529, %v562
        %v595 = vmax.f32 %v530, %v563
        %v596 = vmax.f32 %v531, %v564
        %v597 = vmax.f32 %v532, %v565
        %v598 = vmax.f32 %v533, %v566
        %v599 = vmax.f32 %v534, %v567
        %v600 = vmax.f32 %v535, %v568
        %v601 = vmax.f32 %v536, %v569
        %v602 = vmax.f32 %v537, %v570
        %v603 = vmax.f32 %v538, %v571
        %v604 = vmax.f32 %v539, %v572
        %v605 = vmax.f32 %v540, %v573
        %v606 = vmax.f32 %v541, %v574
        %v607 = vmax.f32 %v542, %v575
        %v608 = vmax.f32 %v543, %v576
        %v609 = vmax.f32 %v544, %v577
        %v610 = vmax.f32 %v545, %v578
        %v611 = vmax.f32 %v546, %v579
        %v612 = vmax.f32 %v547, %v580
        %v613 = vmax.f32 %v548, %v581
        %v614 = vsub.f32 1.0, %v582
        %v615 = vsub.f32 1.0, %v583
        %v616 = vsub.f32 1.0, %v584
        %v617 = vsub.f32 1.0, %v585
        %v618 = vsub.f32 1.0, %v586
        %v619 = vsub.f32 1.0, %v587
        %v620 = vsub.f32 1.0, %v588
        %v621 = vsub.f32 1.0, %v589
        %v622 = vsub.f32 1.0, %v590
        %v623 = vsub.f32 1.0, %v591
        %v624 = vsub.f32 1.0, %v592
        %v625 = vsub.f32 1.0, %v593
        %v626 = vsub.f32 1.0, %v594
        %v627 = vsub.f32 1.0, %v595
        %v628 = vsub.f32 1.0, %v596
        %v629 = vsub.f32 1.0, %v597
        %v630 = vsub.f32 1.0, %v598
        %v631 = vsub.f32 1.0, %v599
        %v632 = vsub.f32 1.0, %v600
        %v633 = vsub.f32 1.0, %v601
        %v634 = vsub.f32 1.0, %v602
        %v635 = vsub.f32 1.0, %v603
        %v636 = vsub.f32 1.0, %v604
        %v637 = vsub.f32 1.0, %v605
        %v638 = vsub.f32 1.0, %v606
        %v639 = vsub.f32 1.0, %v607
        %v640 = vsub.f32 1.0, %v608
        %v641 = vsub.f32 1.0, %v609
        %v642 = vsub.f32 1.0, %v610
        %v643 = vsub.f32 1.0, %v611
        %v644 = vsub.f32 1.0, %v612
        %v645 = vsub.f32 1.0, %v613
        %v646 = vsel %vm115, %v614, 0.0
        %v647 = vsel %vm115, %v615, 0.0
        %v648 = vadd.f32 %v646, %v647
        %v649 = vsel %vm115, %v616, 0.0
        %v650 = vadd.f32 %v648, %v649
        %v651 = vsel %vm115, %v617, 0.0
        %v652 = vadd.f32 %v650, %v651
        %v653 = vsel %vm115, %v618, 0.0
        %v654 = vadd.f32 %v652, %v653
        %v655 = vsel %vm115, %v619, 0.0
        %v656 = vadd.f32 %v654, %v655
        %v657 = vsel %vm115, %v620, 0.0
        %v658 = vadd.f32 %v656, %v657
        %v659 = vsel %vm115, %v621, 0.0
        %v660 = vadd.f32 %v658, %v659
        %v661 = vsel %vm115, %v622, 0.0
        %v662 = vadd.f32 %v660, %v661
        %v663 = vsel %vm115, %v623, 0.0
        %v664 = vadd.f32 %v662, %v663
        %v665 = vsel %vm115, %v624, 0.0
        %v666 = vadd.f32 %v664, %v665
        %v667 = vsel %vm115, %v625, 0.0
        %v668 = vadd.f32 %v666, %v667
        %v669 = vsel %vm115, %v626, 0.0
        %v670 = vadd.f32 %v668, %v669
        %v671 = vsel %vm115, %v627, 0.0
        %v672 = vadd.f32 %v670, %v671
        %v673 = vsel %vm115, %v628, 0.0
        %v674 = vadd.f32 %v672, %v673
        %v675 = vsel %vm115, %v629, 0.0
        %v676 = vadd.f32 %v674, %v675
        %v677 = vsel %vm115, %v630, 0.0
        %v678 = vadd.f32 %v676, %v677
        %v679 = vsel %vm115, %v631, 0.0
        %v680 = vadd.f32 %v678, %v679
        %v681 = vsel %vm115, %v632, 0.0
        %v682 = vadd.f32 %v680, %v681
        %v683 = vsel %vm115, %v633, 0.0
        %v684 = vadd.f32 %v682, %v683
        %v685 = vsel %vm115, %v634, 0.0
        %v686 = vadd.f32 %v684, %v685
        %v687 = vsel %vm115, %v635, 0.0
        %v688 = vadd.f32 %v686, %v687
        %v689 = vsel %vm115, %v636, 0.0
        %v690 = vadd.f32 %v688, %v689
        %v691 = vsel %vm115, %v637, 0.0
        %v692 = vadd.f32 %v690, %v691
        %v693 = vsel %vm115, %v638, 0.0
        %v694 = vadd.f32 %v692, %v693
        %v695 = vsel %vm115, %v639, 0.0
        %v696 = vadd.f32 %v694, %v695
        %v697 = vsel %vm115, %v640, 0.0
        %v698 = vadd.f32 %v696, %v697
        %v699 = vsel %vm115, %v641, 0.0
        %v700 = vadd.f32 %v698, %v699
        %v701 = vsel %vm115, %v642, 0.0
        %v702 = vadd.f32 %v700, %v701
        %v703 = vsel %vm115, %v643, 0.0
        %v704 = vadd.f32 %v702, %v703
        %v705 = vsel %vm115, %v644, 0.0
        %v706 = vadd.f32 %v704, %v705
        %v707 = vsel %vm115, %v645, 0.0
        %v708 = vadd.f32 %v706, %v707
        %709 = vadd.xlane.f32.xlu0 %v708
        %v710 = vpop.xlane.xlu0 %709
        %v711 = vrot.slane %v710, 4
        %v712 = vadd.f32 %v710, %v711
        %v713 = vrot.slane %v712, 2
        %v714 = vadd.f32 %v712, %v713
        %v715 = vrot.slane %v714, 1
        %v716 = vadd.f32 %v714, %v715
        %s717 = vtos %v716
        %v718 = vstv %s717
        %719 = vst [vmem:[%s109] sm:$0xff] %v718
        %s720 = sand.u32 %s49, 1
        %s721 = scalar_lea.sflag [#allocation5], %s720
        %s722 = sand.u32 %s49, 1
        %s723 = smul.addr %s722, 8
        %s724 = scalar_lea.vmem [#allocation4], %s723
        // Predicated region
        $region25: #{tpu_custom_call.1} parent=23 // pred_check
          %p725 = pneg %p59
        $region26: #{tpu_custom_call.1} parent=23 // pred_check_branch
          %727 = sbr.rel (%p725) target = $region28
        $region27: #{tpu_custom_call.1} parent=23 // pred_region
          %s729 = ssub.s32 128, 128
          %730 = vsyncadd %s721, %s729
          %s731 = smul.addr %s15, 128
          %s732 = scalar_lea.hbm %s1, %s731
          %s734 = sshll.u32 %s724, 4
          %s735 = int_to_ptr.vmem [resolvable:$true] %s734
          %737 = dma.vmem_to_hbm [thread:$0]  %s735, 128, %s732, %s721
        $region28: #{tpu_custom_call.1} parent=23 // pred_fallthru
          _
      $region24: #{tpu_custom_call.1} parent=5 // pred_fallthru
        _
      %p738 = scmp.le.s32.totalorder 2, %s10
      // Predicated region
      $region29: #{tpu_custom_call.1} parent=5 // pred_check
        %p739 = pneg %p738
      $region30: #{tpu_custom_call.1} parent=5 // pred_check_branch
        %741 = sbr.rel (%p739) target = $region32
      $region31: #{tpu_custom_call.1} parent=5 // pred_region
        %s742 = ssub.s32 %s10, 2
        // Predicated region
        $region33: #{tpu_custom_call.1} parent=31 // pred_check
          %p743 = pneg %p65
        $region34: #{tpu_custom_call.1} parent=31 // pred_check_branch
          %745 = sbr.rel (%p743) target = $region36
        $region35: #{tpu_custom_call.1} parent=31 // pred_region
          %s746 = sand.u32 %s50, 1
          %s747 = scalar_lea.sflag [#allocation5], %s746
          %s748 = sand.u32 %s50, 1
          %s749 = smul.addr %s748, 8
          %s750 = scalar_lea.vmem [#allocation4], %s749
          %751 = dma.done %s747, 128
        $region36: #{tpu_custom_call.1} parent=31 // pred_fallthru
          _
      $region32: #{tpu_custom_call.1} parent=5 // pred_fallthru
        _
    $region6: #{tpu_custom_call.1} parent=1 // loop_footer
      %s14 = sadd.s32 1, %s10
    $region7: #{tpu_custom_call.1} parent=1 // loop_footer_branch
      %9 = sbr.rel target = $region3
    $region8: #{tpu_custom_call.1} parent=1 // loop_exit
      _
    %752 = vsyncpa [#allocation5], 1
    %s753 = scalar_lea.sflag [#allocation5], 1
    %754 = vsyncpa %s753, 1

</llo_original>
